<compile_context>
chip_gen: v7x
topology: tpu7x:2x2x1
jax: 0.10.0
libtpu: 0.0.40
codegen_flags: <defaults>
</compile_context>

<pallas_src>
import functools

import jax
import jax.numpy as jnp
from jax import lax
from jax.experimental import pallas as pl
from jax.experimental.pallas import tpu as pltpu


def _camera_pose_loss_kernel(s_ref, poses_ref, out_ref, *, norm_p, learnable):
    # poses_ref: (2, 7, N) float32, lane-dense (batch on lanes).
    #   poses_ref[0] = estimated poses, poses_ref[1] = ground-truth poses.
    est = poses_ref[0].astype(jnp.float32)   # (7, N)
    gt = poses_ref[1].astype(jnp.float32)    # (7, N)
    n = est.shape[1]
    inv_n = 1.0 / n

    def p_norm_cols(v):
        # p-norm over the component axis (sublanes) -> one value per batch lane.
        # Matches torch.norm(..., dim=1, p=norm_p) in the original [N, 7] layout.
        if norm_p == 2:
            return jnp.sqrt(jnp.sum(v * v, axis=0, keepdims=True))             # (1, N)
        elif norm_p == 1:
            return jnp.sum(jnp.abs(v), axis=0, keepdims=True)                  # (1, N)
        else:
            return jnp.sum(jnp.abs(v) ** norm_p, axis=0, keepdims=True) ** (1.0 / norm_p)

    # --- translation term ---
    dpos = gt[0:3, :] - est[0:3, :]                                             # (3, N)
    l_x = jnp.sum(p_norm_cols(dpos)) * inv_n

    # --- rotation (quaternion) term ---
    def l2_normalize(v):
        # Matches F.normalize(v, p=2, dim=1): v / max(||v||_2, 1e-12)
        #   == v * rsqrt(max(||v||_2^2, 1e-24))   (sqrt is monotonic)
        n2 = jnp.sum(v * v, axis=0, keepdims=True)                              # (1, N)
        return v * lax.rsqrt(jnp.maximum(n2, 1e-24))

    dq = l2_normalize(gt[3:7, :]) - l2_normalize(est[3:7, :])                   # (4, N)
    l_q = jnp.sum(p_norm_cols(dq)) * inv_n

    s_x = s_ref[0]
    s_q = s_ref[1]

    if learnable:
        total = l_x * jnp.exp(-s_x) + s_x + l_q * jnp.exp(-s_q) + s_q
    else:
        total = s_x * l_x + s_q * l_q

    out_ref[...] = total.reshape(1, 1).astype(out_ref.dtype)


def camera_pose_loss(est_pose, gt_pose, s_x, s_q, *, norm_p=2, learnable=True):
    """est_pose, gt_pose: [N, 7] float32. s_x, s_q: [1] float32. Returns scalar."""
    N, D = est_pose.shape
    assert D == 7 and gt_pose.shape == (N, D)

    # Fuse both pose tensors into a single lane-dense (2, 7, N) slab:
    # one HBM->VMEM DMA instead of two, batch on the 128-wide lane axis.
    poses = jnp.stack(
        [est_pose.astype(jnp.float32), gt_pose.astype(jnp.float32)], axis=0)   # (2, N, 7)
    poses = jnp.transpose(poses, (0, 2, 1))                                     # (2, 7, N)

    # Pack both loss weights into a single (2,) SMEM scalar input.
    s = jnp.concatenate([s_x, s_q]).astype(jnp.float32)                         # (2,)

    kernel = functools.partial(_camera_pose_loss_kernel,
                               norm_p=norm_p, learnable=learnable)

    out = pl.pallas_call(
        kernel,
        out_shape=jax.ShapeDtypeStruct((1, 1), jnp.float32),
        in_specs=[
            pl.BlockSpec(memory_space=pltpu.SMEM),   # s = [s_x, s_q]
            pl.BlockSpec(memory_space=pltpu.VMEM),   # poses (2, 7, N), full block
        ],
        out_specs=pl.BlockSpec(memory_space=pltpu.VMEM),
    )(s, poses)
    return out[0, 0]


def _reference(est_pose, gt_pose, s_x, s_q, norm_p=2, learnable=True):
    def p_norm(v):
        return jnp.sum(jnp.abs(v) ** norm_p, axis=1) ** (1.0 / norm_p)

    def l2n(v):
        n = jnp.linalg.norm(v, axis=1, keepdims=True)
        return v / jnp.maximum(n, 1e-12)

    l_x = jnp.mean(p_norm(gt_pose[:, 0:3] - est_pose[:, 0:3]))
    l_q = jnp.mean(p_norm(l2n(gt_pose[:, 3:]) - l2n(est_pose[:, 3:])))
    sx, sq = s_x[0], s_q[0]
    if learnable:
        return l_x * jnp.exp(-sx) + sx + l_q * jnp.exp(-sq) + sq
    return sx * l_x + sq * l_q


if __name__ == "__main__":
    # Config (as the module's __init__ implies): learnable, s_x, s_q, norm.
    config = {"learnable": True, "s_x": 0.0, "s_q": -3.0, "norm": 2}

    # Deterministic parameter init (synthetic, no checkpoint load).
    s_x = jnp.array([config["s_x"]], dtype=jnp.float32)
    s_q = jnp.array([config["s_q"]], dtype=jnp.float32)

    # Deterministic example inputs: batch of 8 poses [tx, ty, tz, qw, qx, qy, qz].
    key = jax.random.PRNGKey(0)
    k1, k2 = jax.random.split(key)
    N = 8
    est_pose = jax.random.normal(k1, (N, 7), dtype=jnp.float32)
    gt_pose = jax.random.normal(k2, (N, 7), dtype=jnp.float32)

    loss = camera_pose_loss(est_pose, gt_pose, s_x, s_q,
                            norm_p=config["norm"], learnable=config["learnable"])
    loss = jax.block_until_ready(loss)

    ref = _reference(est_pose, gt_pose, s_x, s_q,
                     norm_p=config["norm"], learnable=config["learnable"])
    assert jnp.allclose(loss, ref, rtol=1e-5, atol=1e-5), (loss, ref)

    print("KERNEL_OK")
</pallas_src>

<mosaic_0001>
module attributes {stable_mosaic.version = 11 : i64} {
  func.func @_camera_pose_loss_kernel(%arg0: memref<2xf32, #tpu.memory_space<smem>>, %arg1: memref<2x7x8xf32, #tpu.memory_space<vmem>>, %arg2: memref<1x1xf32, #tpu.memory_space<vmem>>) attributes {dimension_semantics = [], scalar_prefetch = 0 : i64, scratch_operands = 0 : i64, tpu.core_type = #tpu.core_type<tc>} {
    %c0 = arith.constant 0 : index
    %c0_0 = arith.constant 0 : index
    %c0_1 = arith.constant 0 : index
    %0 = vector.load %arg1[%c0, %c0_0, %c0_1] : memref<2x7x8xf32, #tpu.memory_space<vmem>>, vector<1x7x8xf32>
    %1 = vector.shape_cast %0 : vector<1x7x8xf32> to vector<7x8xf32>
    %c1 = arith.constant 1 : index
    %c0_2 = arith.constant 0 : index
    %c0_3 = arith.constant 0 : index
    %2 = vector.load %arg1[%c1, %c0_2, %c0_3] : memref<2x7x8xf32, #tpu.memory_space<vmem>>, vector<1x7x8xf32>
    %3 = vector.shape_cast %2 : vector<1x7x8xf32> to vector<7x8xf32>
    %4 = vector.extract_strided_slice %3 {offsets = [0, 0], sizes = [3, 8], strides = [1, 1]} : vector<7x8xf32> to vector<3x8xf32>
    %5 = vector.extract_strided_slice %1 {offsets = [0, 0], sizes = [3, 8], strides = [1, 1]} : vector<7x8xf32> to vector<3x8xf32>
    %6 = arith.subf %4, %5 : vector<3x8xf32>
    %7 = arith.mulf %6, %6 : vector<3x8xf32>
    %cst = arith.constant dense<0.000000e+00> : vector<8xf32>
    %8 = vector.multi_reduction <add>, %7, %cst [0] : vector<3x8xf32> to vector<8xf32>
    %9 = vector.shape_cast %8 : vector<8xf32> to vector<1x8xf32>
    %10 = math.sqrt %9 : vector<1x8xf32>
    %11 = vector.shape_cast %10 : vector<1x8xf32> to vector<1x1x8xf32>
    %cst_4 = arith.constant dense<0.000000e+00> : vector<1xf32>
    %12 = vector.multi_reduction <add>, %11, %cst_4 [1, 2] : vector<1x1x8xf32> to vector<1xf32>
    %13 = vector.shape_cast %12 : vector<1xf32> to vector<1x1x1xf32>
    %14 = vector.extract %13[0, 0, 0] : f32 from vector<1x1x1xf32>
    %cst_5 = arith.constant 1.250000e-01 : f32
    %15 = arith.mulf %14, %cst_5 : f32
    %16 = vector.extract_strided_slice %3 {offsets = [3, 0], sizes = [4, 8], strides = [1, 1]} : vector<7x8xf32> to vector<4x8xf32>
    %17 = arith.mulf %16, %16 : vector<4x8xf32>
    %cst_6 = arith.constant dense<0.000000e+00> : vector<8xf32>
    %18 = vector.multi_reduction <add>, %17, %cst_6 [0] : vector<4x8xf32> to vector<8xf32>
    %19 = vector.shape_cast %18 : vector<8xf32> to vector<1x8xf32>
    %cst_7 = arith.constant 1.000000e-24 : f32
    %20 = vector.broadcast %cst_7 : f32 to vector<1x8xf32>
    %21 = arith.maximumf %19, %20 : vector<1x8xf32>
    %22 = math.rsqrt %21 : vector<1x8xf32>
    %23 = vector.broadcast %22 : vector<1x8xf32> to vector<4x8xf32>
    %24 = arith.mulf %16, %23 : vector<4x8xf32>
    %25 = vector.extract_strided_slice %1 {offsets = [3, 0], sizes = [4, 8], strides = [1, 1]} : vector<7x8xf32> to vector<4x8xf32>
    %26 = arith.mulf %25, %25 : vector<4x8xf32>
    %cst_8 = arith.constant dense<0.000000e+00> : vector<8xf32>
    %27 = vector.multi_reduction <add>, %26, %cst_8 [0] : vector<4x8xf32> to vector<8xf32>
    %28 = vector.shape_cast %27 : vector<8xf32> to vector<1x8xf32>
    %cst_9 = arith.constant 1.000000e-24 : f32
    %29 = vector.broadcast %cst_9 : f32 to vector<1x8xf32>
    %30 = arith.maximumf %28, %29 : vector<1x8xf32>
    %31 = math.rsqrt %30 : vector<1x8xf32>
    %32 = vector.broadcast %31 : vector<1x8xf32> to vector<4x8xf32>
    %33 = arith.mulf %25, %32 : vector<4x8xf32>
    %34 = arith.subf %24, %33 : vector<4x8xf32>
    %35 = arith.mulf %34, %34 : vector<4x8xf32>
    %cst_10 = arith.constant dense<0.000000e+00> : vector<8xf32>
    %36 = vector.multi_reduction <add>, %35, %cst_10 [0] : vector<4x8xf32> to vector<8xf32>
    %37 = vector.shape_cast %36 : vector<8xf32> to vector<1x8xf32>
    %38 = math.sqrt %37 : vector<1x8xf32>
    %39 = vector.shape_cast %38 : vector<1x8xf32> to vector<1x1x8xf32>
    %cst_11 = arith.constant dense<0.000000e+00> : vector<1xf32>
    %40 = vector.multi_reduction <add>, %39, %cst_11 [1, 2] : vector<1x1x8xf32> to vector<1xf32>
    %41 = vector.shape_cast %40 : vector<1xf32> to vector<1x1x1xf32>
    %42 = vector.extract %41[0, 0, 0] : f32 from vector<1x1x1xf32>
    %cst_12 = arith.constant 1.250000e-01 : f32
    %43 = arith.mulf %42, %cst_12 : f32
    %c0_13 = arith.constant 0 : index
    %44 = memref.load %arg0[%c0_13] : memref<2xf32, #tpu.memory_space<smem>>
    %c1_14 = arith.constant 1 : index
    %45 = memref.load %arg0[%c1_14] : memref<2xf32, #tpu.memory_space<smem>>
    %cst_15 = arith.constant 0.000000e+00 : f32
    %46 = arith.subf %cst_15, %44 : f32
    %47 = math.exp %46 : f32
    %48 = arith.mulf %15, %47 : f32
    %49 = arith.addf %48, %44 : f32
    %cst_16 = arith.constant 0.000000e+00 : f32
    %50 = arith.subf %cst_16, %45 : f32
    %51 = math.exp %50 : f32
    %52 = arith.mulf %43, %51 : f32
    %53 = arith.addf %49, %52 : f32
    %54 = arith.addf %53, %45 : f32
    %55 = vector.broadcast %54 : f32 to vector<1x1xf32>
    %c0_17 = arith.constant 0 : index
    %c0_18 = arith.constant 0 : index
    %56 = vector.load %arg2[%c0_17, %c0_18] : memref<1x1xf32, #tpu.memory_space<vmem>>, vector<1x1xf32>
    tpu.vector_store %arg2[%c0_17, %c0_18], %55 {strides = array<i32>} : memref<1x1xf32, #tpu.memory_space<vmem>>, vector<1x1xf32>,
    return
  }
}

</mosaic_0001>

<llo_original>
// kernel: tpu_custom_call.1
$region0: #{tpu_custom_call.1}
  #allocation0 [shape = 'u32[]', space=smem, size = 0x4, offset = 0x4, fixed_abs, tag = 'smem constant byte address 0x4 - core index']
  #allocation1 [shape = 'u32[144,128]{1,0:T(1,128)}', space=vmem, size = 0x12000, scoped, tag = 'internal scratch']
  %s0 = inlined_call_operand.vmem [shape: f32[2], index: 0, kind: input, shape index: {}]
  %s1 = inlined_call_operand.vmem [shape: f32[2,7,8], index: 1, kind: input, shape index: {}]
  %s2 = inlined_call_operand.hbm [shape: f32[1,1], index: 2, kind: output, shape index: {}]
  %s3 = sld [smem:[#allocation0]]
  $region22: #{tpu_custom_call.1} parent=0
    _
  %s5 = ssub.s32 1, %s3
  %s6 = scalar_select 0, %s5, %s3
  $region1: #{tpu_custom_call.1} parent=0
    #allocation2 [shape = 'u8[512]{0}', space=smem, size = 0x200, scoped, tag = 'input window, operand 0, single buffered']
    #allocation3 [shape = 's32[1]{0}', space=sflag, size = 0x4, scoped, tag = 'scoped memory for tpu_custom_call.1']
    #allocation4 [shape = 's32[1]{0}', space=sflag, size = 0x4, scoped, tag = 'scoped memory for tpu_custom_call.1']
    #allocation5 [shape = 'u8[512]{0}', space=vmem, size = 0x400, scoped, tag = 'output window, operand 0, single buffered']
    %7 = vsyncpa [#allocation4], 0
    %8 = vsyncpa [#allocation3], 0
    // Predicated region
    $region2: #{tpu_custom_call.1} parent=1 // pred_check
      _
    $region3: #{tpu_custom_call.1} parent=1 // pred_check_branch
      %10 = sbr.rel (0) target = $region5
    $region4: #{tpu_custom_call.1} parent=1 // pred_region
      %s12 = ssub.s32 16, 16
      %13 = vsyncadd [#allocation4], %s12
      %s15 = sshll.u32 %s0, 4
      %s16 = int_to_ptr.vmem [resolvable:$true] %s15
      %18 = dma.vmem_to_smem %s16, 16, [#allocation2], [#allocation4]
    $region5: #{tpu_custom_call.1} parent=1 // pred_fallthru
      _
    // Predicated region
    $region6: #{tpu_custom_call.1} parent=1 // pred_check
      _
    $region7: #{tpu_custom_call.1} parent=1 // pred_check_branch
      %20 = sbr.rel (0) target = $region9
    $region8: #{tpu_custom_call.1} parent=1 // pred_region
      _
    $region9: #{tpu_custom_call.1} parent=1 // pred_fallthru
      _
    // Predicated region
    $region10: #{tpu_custom_call.1} parent=1 // pred_check
      _
    $region11: #{tpu_custom_call.1} parent=1 // pred_check_branch
      %22 = sbr.rel (0) target = $region13
    $region12: #{tpu_custom_call.1} parent=1 // pred_region
      %23 = dma.done [#allocation4], 16
    $region13: #{tpu_custom_call.1} parent=1 // pred_fallthru
      _
    %24 = sfence
    %v25 = vld [vmem:[%s1] sm:$0x7f]
    %s26 = scalar_lea.vmem %s1, 8
    %v27 = vld [vmem:[%s26] sm:$0x7f]
    %v28 = vsub.f32 %v27, %v25
    %v29 = vmul.f32 %v28, %v28
    %vm30 = vcmask 59392
    %v31 = vsel %vm30, %v29, 0.0
    %v32 = vrot.slane %v31, 4
    %v33 = vadd.f32 %v31, %v32
    %v34 = vrot.slane %v33, 2
    %v35 = vadd.f32 %v33, %v34
    %v36 = vrot.slane %v35, 1
    %v37 = vadd.f32 %v35, %v36
    %v38 = vrsqrt.pop %v37
    %v39 = vmul.f32 %v37, %v38
    %vm40 = vcmp.eq.f32.partialorder %v37, inf
    %v41 = vsel %vm40, %v37, %v39
    %vm42 = vcmp.eq.f32.partialorder %v37, 0.0
    %v43 = vand.u32 %v37, 2147483648
    %v44 = vsel %vm42, %v43, %v41
    %vm45 = vcmask 57344
    %v46 = vsel %vm45, %v44, 0.0
    %47 = vadd.xlane.f32.xlu0 %v46
    %v48 = vpop.xlane.xlu0 %47
    %v49 = vrot.slane %v48, 4
    %v50 = vadd.f32 %v48, %v49
    %v51 = vrot.slane %v50, 2
    %v52 = vadd.f32 %v50, %v51
    %v53 = vrot.slane %v52, 1
    %v54 = vadd.f32 %v52, %v53
    %s55 = vtos %v54
    %s56 = smul.f32 %s55, 0.125
    %v57 = vmul.f32 %v27, %v27
    %v59 = vrot.slane %v57, 3
    %vm61 = vcmask 60416
    %v62 = vsel %vm61, %v59, 0.0
    %v63 = vrot.slane %v62, 4
    %v64 = vadd.f32 %v62, %v63
    %v65 = vrot.slane %v64, 2
    %v66 = vadd.f32 %v64, %v65
    %v67 = vrot.slane %v66, 1
    %v68 = vadd.f32 %v66, %v67
    %v69 = vmax.f32 %v68, 1e-24
    %v70 = vrsqrt.pop %v69
    %v71 = vmul.f32 %v27, %v70
    %v72 = vmul.f32 %v25, %v25
    %v74 = vrot.slane %v72, 3
    %v76 = vsel %vm61, %v74, 0.0
    %v77 = vrot.slane %v76, 4
    %v78 = vadd.f32 %v76, %v77
    %v79 = vrot.slane %v78, 2
    %v80 = vadd.f32 %v78, %v79
    %v81 = vrot.slane %v80, 1
    %v82 = vadd.f32 %v80, %v81
    %v83 = vmax.f32 %v82, 1e-24
    %v84 = vrsqrt.pop %v83
    %v85 = vmul.f32 %v25, %v84
    %v86 = vsub.f32 %v71, %v85
    %v87 = vmul.f32 %v86, %v86
    %v89 = vrot.slane %v87, 3
    %v91 = vsel %vm61, %v89, 0.0
    %v92 = vrot.slane %v91, 4
    %v93 = vadd.f32 %v91, %v92
    %v94 = vrot.slane %v93, 2
    %v95 = vadd.f32 %v93, %v94
    %v96 = vrot.slane %v95, 1
    %v97 = vadd.f32 %v95, %v96
    %v98 = vrsqrt.pop %v97
    %v99 = vmul.f32 %v97, %v98
    %vm100 = vcmp.eq.f32.partialorder %v97, inf
    %v101 = vsel %vm100, %v97, %v99
    %vm102 = vcmp.eq.f32.partialorder %v97, 0.0
    %v103 = vand.u32 %v97, 2147483648
    %v104 = vsel %vm102, %v103, %v101
    %v105 = vsel %vm45, %v104, 0.0
    %106 = vadd.xlane.f32.xlu0 %v105
    %v107 = vpop.xlane.xlu0 %106
    %v108 = vrot.slane %v107, 4
    %v109 = vadd.f32 %v107, %v108
    %v110 = vrot.slane %v109, 2
    %v111 = vadd.f32 %v109, %v110
    %v112 = vrot.slane %v111, 1
    %v113 = vadd.f32 %v111, %v112
    %s114 = vtos %v113
    %s115 = smul.f32 %s114, 0.125
    %s116 = sld [smem:[#allocation2]]
    %s117 = sld [smem:[#allocation2 + $0x1]]
    %s118 = ssub.f32 0.0, %s116
    %v119 = vstv %s118
    %v120 = vmul.f32 %v119, 1.442695
    %v121 = vpow.pop %v120
    %s122 = vtos %v121
    %s123 = smul.f32 %s56, %s122
    %s124 = sadd.f32 %s123, %s116
    %s125 = ssub.f32 0.0, %s117
    %v126 = vstv %s125
    %v127 = vmul.f32 %v126, 1.442695
    %v128 = vpow.pop %v127
    %s129 = vtos %v128
    %s130 = smul.f32 %s115, %s129
    %s131 = sadd.f32 %s124, %s130
    %s132 = sadd.f32 %s131, %s117
    %v133 = vstv %s132
    %vm134 = vcmask 0
    %135 = vst.msk [vmem:[#allocation5] sm:$0x1] %vm134, %v133
    // Predicated region
    $region14: #{tpu_custom_call.1} parent=1 // pred_check
      _
    $region15: #{tpu_custom_call.1} parent=1 // pred_check_branch
      %137 = sbr.rel (0) target = $region17
    $region16: #{tpu_custom_call.1} parent=1 // pred_region
      %s139 = ssub.s32 16, 16
      %140 = vsyncadd [#allocation3], %s139
      %s142 = sshll.u32 [#allocation5], 4
      %s143 = int_to_ptr.vmem [resolvable:$true] %s142
      %145 = dma.vmem_to_hbm [thread:$0]  %s143, 16, %s2, [#allocation3]
    $region17: #{tpu_custom_call.1} parent=1 // pred_fallthru
      _
    // Predicated region
    $region18: #{tpu_custom_call.1} parent=1 // pred_check
      _
    $region19: #{tpu_custom_call.1} parent=1 // pred_check_branch
      %147 = sbr.rel (0) target = $region21
    $region20: #{tpu_custom_call.1} parent=1 // pred_region
      %148 = dma.done [#allocation3], 16
    $region21: #{tpu_custom_call.1} parent=1 // pred_fallthru
      _
    %149 = vsyncpa [#allocation3], 1
    %150 = vsyncpa [#allocation4], 1

</llo_original>
